<compile_context>
chip_gen: v5e
topology: v5e:2x2
jax: 0.10.0
libtpu: 0.0.40
codegen_flags: <defaults>
</compile_context>

<pallas_src>
import functools

import jax
import jax.numpy as jnp
from jax.experimental import pallas as pl
from jax.experimental.pallas import tpu as pltpu


# Geometry fixed by the module: 32x32x3 input, 5x5 kernels, 2x2 pools.
K1, K1_PAD, C1_OUT = 3 * 5 * 5, 80, 6          # conv1: 3 -> 6, 5x5
K2, K2_PAD, C2_OUT = 6 * 5 * 5, 160, 16        # conv2: 6 -> 16, 5x5
FC_IN = 16 * 5 * 5                             # 400
FC_PAD = 128                                   # padded lane width of every FC layer
MAX_LANE_TILE = 8192                           # conv lane-tile cap (multiple of 128)
MAX_FC_BATCH_TILE = 256                        # fc batch-tile cap (multiple of 8)


def _round_up(x, m):
    return (x + m - 1) // m * m


# ----------------------------------------------------------------------------
# Pallas kernels
# ----------------------------------------------------------------------------
def _conv_mm_kernel(p_ref, w_ref, b_ref, o_ref):
    """Batch-folded, lane-dense conv-as-matmul with fused bias + ReLU.

    p: (K_pad, L) bf16 im2col patches (L = lane tile over batch*OH*OW, multiple of 128)
    w: (C_out, K_pad) bf16    b: (C_out, 1) f32    o: (C_out, L) bf16
    """
    acc = jnp.dot(w_ref[...], p_ref[...], preferred_element_type=jnp.float32)
    o_ref[...] = jnp.maximum(acc + b_ref[...], 0.0).astype(o_ref.dtype)  # f32 epilogue


def _fc_chain_kernel(x_ref, w1_ref, b1_ref, w2_ref, b2_ref, w3_ref, b3_ref, o_ref):
    """fc1+ReLU -> fc2+ReLU -> fc3 fully fused; all widths padded to 128 (lane dense)."""
    h = jnp.dot(x_ref[...], w1_ref[...], preferred_element_type=jnp.float32)
    h = jnp.maximum(h + b1_ref[...], 0.0)
    h = jnp.dot(h.astype(jnp.bfloat16), w2_ref[...], preferred_element_type=jnp.float32)
    h = jnp.maximum(h + b2_ref[...], 0.0)
    h = jnp.dot(h.astype(jnp.bfloat16), w3_ref[...], preferred_element_type=jnp.float32)
    o_ref[...] = h + b3_ref[...]


# ----------------------------------------------------------------------------
# Pallas wrappers
# ----------------------------------------------------------------------------
def conv_mm(patches, w, b, lane_tile):
    """patches (K_pad, L) bf16, w (C_out, K_pad) bf16, b (C_out, 1) f32 -> (C_out, L) bf16."""
    k, total = patches.shape
    c_out = w.shape[0]
    return pl.pallas_call(
        _conv_mm_kernel,
        out_shape=jax.ShapeDtypeStruct((c_out, total), jnp.bfloat16),
        grid=(total // lane_tile,),
        in_specs=[
            pl.BlockSpec((k, lane_tile), lambda i: (0, i)),   # patches: lane tiles
            pl.BlockSpec((c_out, k), lambda i: (0, 0)),       # weights: VMEM-resident
            pl.BlockSpec((c_out, 1), lambda i: (0, 0)),       # bias:    VMEM-resident
        ],
        out_specs=pl.BlockSpec((c_out, lane_tile), lambda i: (0, i)),
        compiler_params=pltpu.CompilerParams(dimension_semantics=("parallel",)),
    )(patches, w, b)


def fc_chain(x, p):
    """x (N, 400) bf16 -> (N, 128) f32 padded logits (slice to num_classes outside)."""
    n = x.shape[0]
    bt = min(_round_up(n, 8), MAX_FC_BATCH_TILE)
    n_pad = _round_up(n, bt)
    if n_pad > n:
        x = jnp.pad(x, ((0, n_pad - n), (0, 0)))
    out = pl.pallas_call(
        _fc_chain_kernel,
        out_shape=jax.ShapeDtypeStruct((n_pad, FC_PAD), jnp.float32),
        grid=(n_pad // bt,),
        in_specs=[
            pl.BlockSpec((bt, FC_IN), lambda i: (i, 0)),       # activations: batch tiles
            pl.BlockSpec((FC_IN, FC_PAD), lambda i: (0, 0)),   # fc1 weights (400, 128)
            pl.BlockSpec((1, FC_PAD), lambda i: (0, 0)),
            pl.BlockSpec((FC_PAD, FC_PAD), lambda i: (0, 0)),  # fc2 weights (128, 128)
            pl.BlockSpec((1, FC_PAD), lambda i: (0, 0)),
            pl.BlockSpec((FC_PAD, FC_PAD), lambda i: (0, 0)),  # fc3 weights (128, 128)
            pl.BlockSpec((1, FC_PAD), lambda i: (0, 0)),
        ],
        out_specs=pl.BlockSpec((bt, FC_PAD), lambda i: (i, 0)),
        compiler_params=pltpu.CompilerParams(dimension_semantics=("parallel",)),
    )(x, p["fc1_w"], p["fc1_b"], p["fc2_w"], p["fc2_b"], p["fc3_w"], p["fc3_b"])
    return out[:n]


# ----------------------------------------------------------------------------
# Glue (pure slicing / strided maxima — no large runtime transposes)
# ----------------------------------------------------------------------------
def _lane_pad_and_tile(nm):
    """Pad the lane extent to a multiple of 128 (or of the tile) and pick the tile."""
    nm128 = _round_up(nm, 128)
    if nm128 <= MAX_LANE_TILE:
        return nm128, nm128
    return _round_up(nm, MAX_LANE_TILE), MAX_LANE_TILE


def im2col_knm(x_cnhw, kh, kw, k_pad, lane_pad):
    """x (C, N, H, W) -> (k_pad, lane_pad) patches.  K ordered (c, kh, kw) to match
    PyTorch's weight.reshape(C_out, C_in*KH*KW); lanes ordered (n, oh, ow).
    K zero-padded to a multiple of 16, lanes zero-padded to a multiple of 128."""
    c, n, h, w = x_cnhw.shape
    oh, ow = h - kh + 1, w - kw + 1
    taps = [x_cnhw[:, :, i:i + oh, j:j + ow] for i in range(kh) for j in range(kw)]
    p = jnp.stack(taps, axis=1).reshape(c * kh * kw, n * oh * ow)
    return jnp.pad(p, ((0, k_pad - c * kh * kw), (0, lane_pad - n * oh * ow)))


def maxpool2x2(x):
    """(..., H, W) -> (..., H//2, W//2) via strided maxima (no 6-D transpose)."""
    return jnp.maximum(
        jnp.maximum(x[..., 0::2, 0::2], x[..., 0::2, 1::2]),
        jnp.maximum(x[..., 1::2, 0::2], x[..., 1::2, 1::2]),
    )


# ----------------------------------------------------------------------------
# Parameters: PyTorch-layout init, then one-time pre-packing into kernel layouts
# ----------------------------------------------------------------------------
def init_params(key, num_classes=10):
    def uniform_init(k, shape, fan_in):
        bound = 1.0 / jnp.sqrt(jnp.float32(fan_in))
        return jax.random.uniform(k, shape, jnp.float32, -bound, bound)

    keys = jax.random.split(key, 10)
    return {
        "conv1_w": uniform_init(keys[0], (6, 3, 5, 5), K1),
        "conv1_b": uniform_init(keys[1], (6,), K1),
        "conv2_w": uniform_init(keys[2], (16, 6, 5, 5), K2),
        "conv2_b": uniform_init(keys[3], (16,), K2),
        "fc1_w": uniform_init(keys[4], (120, FC_IN), FC_IN),
        "fc1_b": uniform_init(keys[5], (120,), FC_IN),
        "fc2_w": uniform_init(keys[6], (84, 120), 120),
        "fc2_b": uniform_init(keys[7], (84,), 120),
        "fc3_w": uniform_init(keys[8], (num_classes, 84), 84),
        "fc3_b": uniform_init(keys[9], (num_classes,), 84),
    }


def pack_params(p):
    """Kernel-ready layouts: bf16 matmul operands (K and widths zero-padded),
    f32 biases, FC weights pre-transposed to (K, N_pad)."""
    def pad2d(a, rows, cols):
        return jnp.pad(a, ((0, rows - a.shape[0]), (0, cols - a.shape[1])))

    return {
        "c1_w": pad2d(p["conv1_w"].reshape(C1_OUT, K1), C1_OUT, K1_PAD).astype(jnp.bfloat16),
        "c1_b": p["conv1_b"].reshape(C1_OUT, 1).astype(jnp.float32),
        "c2_w": pad2d(p["conv2_w"].reshape(C2_OUT, K2), C2_OUT, K2_PAD).astype(jnp.bfloat16),
        "c2_b": p["conv2_b"].reshape(C2_OUT, 1).astype(jnp.float32),
        "fc1_w": pad2d(p["fc1_w"].T, FC_IN, FC_PAD).astype(jnp.bfloat16),        # (400, 128)
        "fc1_b": pad2d(p["fc1_b"].reshape(1, -1), 1, FC_PAD).astype(jnp.float32),
        "fc2_w": pad2d(p["fc2_w"].T, FC_PAD, FC_PAD).astype(jnp.bfloat16),       # (128, 128)
        "fc2_b": pad2d(p["fc2_b"].reshape(1, -1), 1, FC_PAD).astype(jnp.float32),
        "fc3_w": pad2d(p["fc3_w"].T, FC_PAD, FC_PAD).astype(jnp.bfloat16),       # (128, 128)
        "fc3_b": pad2d(p["fc3_b"].reshape(1, -1), 1, FC_PAD).astype(jnp.float32),
    }


# ----------------------------------------------------------------------------
# Forward pass (mirrors Net.forward)
# ----------------------------------------------------------------------------
@functools.partial(jax.jit, static_argnames=("num_classes",))
def net_forward(x_nchw, params, num_classes=10):
    n = x_nchw.shape[0]
    # Keep activations in (C, N, H, W) so the batch folds into the conv matmul's lane
    # dim; only one small transpose of the input and one of the (16, N, 5, 5) output.
    x = jnp.transpose(x_nchw, (1, 0, 2, 3)).astype(jnp.bfloat16)           # (3, N, 32, 32)

    # conv1 (3->6, 5x5) + ReLU [Pallas, batch-folded lane-dense], then 2x2 max-pool
    nm1 = n * 28 * 28
    lpad1, tile1 = _lane_pad_and_tile(nm1)
    y = conv_mm(im2col_knm(x, 5, 5, K1_PAD, lpad1), params["c1_w"], params["c1_b"], tile1)
    y = maxpool2x2(y[:, :nm1].reshape(C1_OUT, n, 28, 28))                  # (6, N, 14, 14)

    # conv2 (6->16, 5x5) + ReLU, then 2x2 max-pool
    nm2 = n * 10 * 10
    lpad2, tile2 = _lane_pad_and_tile(nm2)
    y = conv_mm(im2col_knm(y, 5, 5, K2_PAD, lpad2), params["c2_w"], params["c2_b"], tile2)
    y = maxpool2x2(y[:, :nm2].reshape(C2_OUT, n, 10, 10))                  # (16, N, 5, 5)

    # torch.flatten(x, 1): back to per-example (c, h, w) order
    y = jnp.transpose(y, (1, 0, 2, 3)).reshape(n, FC_IN)                   # (N, 400) bf16

    # fc1+ReLU -> fc2+ReLU -> fc3, fused in one batch-tiled Pallas call; width padded
    # to 128 inside, slice the real classes here.
    return fc_chain(y, params)[:, :num_classes]                            # (N, nc) f32


if __name__ == "__main__":
    key = jax.random.PRNGKey(0)
    k_param, k_input = jax.random.split(key)
    params = pack_params(init_params(k_param, num_classes=10))

    # Input must be (N, 3, 32, 32) so that 16*5*5 = 400 matches fc1.
    x = jax.random.normal(k_input, (2, 3, 32, 32), dtype=jnp.float32)

    out = jax.block_until_ready(net_forward(x, params, num_classes=10))
    assert out.shape == (2, 10) and out.dtype == jnp.float32
    assert bool(jnp.all(jnp.isfinite(out)))
    print("KERNEL_OK")
</pallas_src>

<mosaic_0001>
module attributes {stable_mosaic.version = 11 : i64} {
  func.func @_conv_mm_kernel(%arg0: i32, %arg1: memref<80x1664xbf16, #tpu.memory_space<vmem>>, %arg2: memref<6x80xbf16, #tpu.memory_space<vmem>>, %arg3: memref<6x1xf32, #tpu.memory_space<vmem>>, %arg4: memref<6x1664xbf16, #tpu.memory_space<vmem>>) attributes {dimension_semantics = [#tpu.dimension_semantics<parallel>], iteration_bounds = array<i64: 1>, scalar_prefetch = 0 : i64, scratch_operands = 0 : i64, tpu.core_type = #tpu.core_type<tc>, window_params = [{transform_indices = @transform_0, window_bounds = array<i64: 80, 1664>}, {pipeline_mode = #tpu.pipeline_mode<synchronous>, transform_indices = @transform_1, window_bounds = array<i64: 6, 80>}, {pipeline_mode = #tpu.pipeline_mode<synchronous>, transform_indices = @transform_2, window_bounds = array<i64: 6, 1>}, {transform_indices = @transform_3, window_bounds = array<i64: 6, 1664>}]} {
    %c0 = arith.constant 0 : index
    %c0_0 = arith.constant 0 : index
    %0 = vector.load %arg2[%c0, %c0_0] : memref<6x80xbf16, #tpu.memory_space<vmem>>, vector<6x80xbf16>
    %c0_1 = arith.constant 0 : index
    %c0_2 = arith.constant 0 : index
    %1 = vector.load %arg1[%c0_1, %c0_2] : memref<80x1664xbf16, #tpu.memory_space<vmem>>, vector<80x1664xbf16>
    %cst = arith.constant dense<0.000000e+00> : vector<6x1664xf32>
    %2 = tpu.matmul %0, %1, %cst {dimension_numbers = #tpu.dot_dimension_numbers<[1], [0], [0], [1], [0, 0, 1, 1], [], []>} : vector<6x80xbf16>, vector<80x1664xbf16>, vector<6x1664xf32> -> vector<6x1664xf32>
    %c0_3 = arith.constant 0 : index
    %c0_4 = arith.constant 0 : index
    %3 = vector.load %arg3[%c0_3, %c0_4] : memref<6x1xf32, #tpu.memory_space<vmem>>, vector<6x1xf32>
    %4 = vector.broadcast %3 : vector<6x1xf32> to vector<6x1664xf32>
    %5 = arith.addf %2, %4 : vector<6x1664xf32>
    %cst_5 = arith.constant 0.000000e+00 : f32
    %6 = vector.broadcast %cst_5 : f32 to vector<6x1664xf32>
    %7 = arith.maximumf %5, %6 : vector<6x1664xf32>
    %8 = arith.truncf %7 : vector<6x1664xf32> to vector<6x1664xbf16>
    %c0_6 = arith.constant 0 : index
    %c0_7 = arith.constant 0 : index
    %9 = vector.load %arg4[%c0_6, %c0_7] : memref<6x1664xbf16, #tpu.memory_space<vmem>>, vector<6x1664xbf16>
    tpu.vector_store %arg4[%c0_6, %c0_7], %8 {strides = array<i32>} : memref<6x1664xbf16, #tpu.memory_space<vmem>>, vector<6x1664xbf16>,
    return
  }
  func.func @transform_0(%arg0: i32) -> (i32, i32) {
    %c0_i32 = arith.constant 0 : i32
    %c0_i32_0 = arith.constant 0 : i32
    return %c0_i32, %arg0 : i32, i32
  }
  func.func @transform_1(%arg0: i32) -> (i32, i32) {
    %c0_i32 = arith.constant 0 : i32
    %c0_i32_0 = arith.constant 0 : i32
    %c0_i32_1 = arith.constant 0 : i32
    return %c0_i32, %c0_i32_0 : i32, i32
  }
  func.func @transform_2(%arg0: i32) -> (i32, i32) {
    %c0_i32 = arith.constant 0 : i32
    %c0_i32_0 = arith.constant 0 : i32
    %c0_i32_1 = arith.constant 0 : i32
    return %c0_i32, %c0_i32_0 : i32, i32
  }
  func.func @transform_3(%arg0: i32) -> (i32, i32) {
    %c0_i32 = arith.constant 0 : i32
    %c0_i32_0 = arith.constant 0 : i32
    return %c0_i32, %arg0 : i32, i32
  }
}

module attributes {stable_mosaic.version = 11 : i64} {
  func.func @_conv_mm_kernel(%arg0: i32, %arg1: memref<160x256xbf16, #tpu.memory_space<vmem>>, %arg2: memref<16x160xbf16, #tpu.memory_space<vmem>>, %arg3: memref<16x1xf32, #tpu.memory_space<vmem>>, %arg4: memref<16x256xbf16, #tpu.memory_space<vmem>>) attributes {dimension_semantics = [#tpu.dimension_semantics<parallel>], iteration_bounds = array<i64: 1>, scalar_prefetch = 0 : i64, scratch_operands = 0 : i64, tpu.core_type = #tpu.core_type<tc>, window_params = [{transform_indices = @transform_0, window_bounds = array<i64: 160, 256>}, {pipeline_mode = #tpu.pipeline_mode<synchronous>, transform_indices = @transform_1, window_bounds = array<i64: 16, 160>}, {pipeline_mode = #tpu.pipeline_mode<synchronous>, transform_indices = @transform_2, window_bounds = array<i64: 16, 1>}, {transform_indices = @transform_3, window_bounds = array<i64: 16, 256>}]} {
    %c0 = arith.constant 0 : index
    %c0_0 = arith.constant 0 : index
    %0 = vector.load %arg2[%c0, %c0_0] : memref<16x160xbf16, #tpu.memory_space<vmem>>, vector<16x160xbf16>
    %c0_1 = arith.constant 0 : index
    %c0_2 = arith.constant 0 : index
    %1 = vector.load %arg1[%c0_1, %c0_2] : memref<160x256xbf16, #tpu.memory_space<vmem>>, vector<160x256xbf16>
    %cst = arith.constant dense<0.000000e+00> : vector<16x256xf32>
    %2 = tpu.matmul %0, %1, %cst {dimension_numbers = #tpu.dot_dimension_numbers<[1], [0], [0], [1], [0, 0, 1, 1], [], []>} : vector<16x160xbf16>, vector<160x256xbf16>, vector<16x256xf32> -> vector<16x256xf32>
    %c0_3 = arith.constant 0 : index
    %c0_4 = arith.constant 0 : index
    %3 = vector.load %arg3[%c0_3, %c0_4] : memref<16x1xf32, #tpu.memory_space<vmem>>, vector<16x1xf32>
    %4 = vector.broadcast %3 : vector<16x1xf32> to vector<16x256xf32>
    %5 = arith.addf %2, %4 : vector<16x256xf32>
    %cst_5 = arith.constant 0.000000e+00 : f32
    %6 = vector.broadcast %cst_5 : f32 to vector<16x256xf32>
    %7 = arith.maximumf %5, %6 : vector<16x256xf32>
    %8 = arith.truncf %7 : vector<16x256xf32> to vector<16x256xbf16>
    %c0_6 = arith.constant 0 : index
    %c0_7 = arith.constant 0 : index
    %9 = vector.load %arg4[%c0_6, %c0_7] : memref<16x256xbf16, #tpu.memory_space<vmem>>, vector<16x256xbf16>
    tpu.vector_store %arg4[%c0_6, %c0_7], %8 {strides = array<i32>} : memref<16x256xbf16, #tpu.memory_space<vmem>>, vector<16x256xbf16>,
    return
  }
  func.func @transform_0(%arg0: i32) -> (i32, i32) {
    %c0_i32 = arith.constant 0 : i32
    %c0_i32_0 = arith.constant 0 : i32
    return %c0_i32, %arg0 : i32, i32
  }
  func.func @transform_1(%arg0: i32) -> (i32, i32) {
    %c0_i32 = arith.constant 0 : i32
    %c0_i32_0 = arith.constant 0 : i32
    %c0_i32_1 = arith.constant 0 : i32
    return %c0_i32, %c0_i32_0 : i32, i32
  }
  func.func @transform_2(%arg0: i32) -> (i32, i32) {
    %c0_i32 = arith.constant 0 : i32
    %c0_i32_0 = arith.constant 0 : i32
    %c0_i32_1 = arith.constant 0 : i32
    return %c0_i32, %c0_i32_0 : i32, i32
  }
  func.func @transform_3(%arg0: i32) -> (i32, i32) {
    %c0_i32 = arith.constant 0 : i32
    %c0_i32_0 = arith.constant 0 : i32
    return %c0_i32, %arg0 : i32, i32
  }
}

module attributes {stable_mosaic.version = 11 : i64} {
  func.func @_fc_chain_kernel(%arg0: i32, %arg1: memref<8x400xbf16, #tpu.memory_space<vmem>>, %arg2: memref<400x128xbf16, #tpu.memory_space<vmem>>, %arg3: memref<1x128xf32, #tpu.memory_space<vmem>>, %arg4: memref<128x128xbf16, #tpu.memory_space<vmem>>, %arg5: memref<1x128xf32, #tpu.memory_space<vmem>>, %arg6: memref<128x128xbf16, #tpu.memory_space<vmem>>, %arg7: memref<1x128xf32, #tpu.memory_space<vmem>>, %arg8: memref<8x128xf32, #tpu.memory_space<vmem>>) attributes {dimension_semantics = [#tpu.dimension_semantics<parallel>], iteration_bounds = array<i64: 1>, scalar_prefetch = 0 : i64, scratch_operands = 0 : i64, tpu.core_type = #tpu.core_type<tc>, window_params = [{transform_indices = @transform_0, window_bounds = array<i64: 8, 400>}, {pipeline_mode = #tpu.pipeline_mode<synchronous>, transform_indices = @transform_1, window_bounds = array<i64: 400, 128>}, {pipeline_mode = #tpu.pipeline_mode<synchronous>, transform_indices = @transform_2, window_bounds = array<i64: 1, 128>}, {pipeline_mode = #tpu.pipeline_mode<synchronous>, transform_indices = @transform_3, window_bounds = array<i64: 128, 128>}, {pipeline_mode = #tpu.pipeline_mode<synchronous>, transform_indices = @transform_4, window_bounds = array<i64: 1, 128>}, {pipeline_mode = #tpu.pipeline_mode<synchronous>, transform_indices = @transform_5, window_bounds = array<i64: 128, 128>}, {pipeline_mode = #tpu.pipeline_mode<synchronous>, transform_indices = @transform_6, window_bounds = array<i64: 1, 128>}, {transform_indices = @transform_7, window_bounds = array<i64: 8, 128>}]} {
    %c0 = arith.constant 0 : index
    %c0_0 = arith.constant 0 : index
    %0 = vector.load %arg1[%c0, %c0_0] : memref<8x400xbf16, #tpu.memory_space<vmem>>, vector<8x400xbf16>
    %c0_1 = arith.constant 0 : index
    %c0_2 = arith.constant 0 : index
    %1 = vector.load %arg2[%c0_1, %c0_2] : memref<400x128xbf16, #tpu.memory_space<vmem>>, vector<400x128xbf16>
    %cst = arith.constant dense<0.000000e+00> : vector<8x128xf32>
    %2 = tpu.matmul %0, %1, %cst {dimension_numbers = #tpu.dot_dimension_numbers<[1], [0], [0], [1], [0, 0, 1, 1], [], []>} : vector<8x400xbf16>, vector<400x128xbf16>, vector<8x128xf32> -> vector<8x128xf32>
    %c0_3 = arith.constant 0 : index
    %c0_4 = arith.constant 0 : index
    %3 = vector.load %arg3[%c0_3, %c0_4] : memref<1x128xf32, #tpu.memory_space<vmem>>, vector<1x128xf32>
    %4 = vector.broadcast %3 : vector<1x128xf32> to vector<8x128xf32>
    %5 = arith.addf %2, %4 : vector<8x128xf32>
    %cst_5 = arith.constant 0.000000e+00 : f32
    %6 = vector.broadcast %cst_5 : f32 to vector<8x128xf32>
    %7 = arith.maximumf %5, %6 : vector<8x128xf32>
    %8 = arith.truncf %7 : vector<8x128xf32> to vector<8x128xbf16>
    %c0_6 = arith.constant 0 : index
    %c0_7 = arith.constant 0 : index
    %9 = vector.load %arg4[%c0_6, %c0_7] : memref<128x128xbf16, #tpu.memory_space<vmem>>, vector<128x128xbf16>
    %cst_8 = arith.constant dense<0.000000e+00> : vector<8x128xf32>
    %10 = tpu.matmul %8, %9, %cst_8 {dimension_numbers = #tpu.dot_dimension_numbers<[1], [0], [0], [1], [0, 0, 1, 1], [], []>} : vector<8x128xbf16>, vector<128x128xbf16>, vector<8x128xf32> -> vector<8x128xf32>
    %c0_9 = arith.constant 0 : index
    %c0_10 = arith.constant 0 : index
    %11 = vector.load %arg5[%c0_9, %c0_10] : memref<1x128xf32, #tpu.memory_space<vmem>>, vector<1x128xf32>
    %12 = vector.broadcast %11 : vector<1x128xf32> to vector<8x128xf32>
    %13 = arith.addf %10, %12 : vector<8x128xf32>
    %cst_11 = arith.constant 0.000000e+00 : f32
    %14 = vector.broadcast %cst_11 : f32 to vector<8x128xf32>
    %15 = arith.maximumf %13, %14 : vector<8x128xf32>
    %16 = arith.truncf %15 : vector<8x128xf32> to vector<8x128xbf16>
    %c0_12 = arith.constant 0 : index
    %c0_13 = arith.constant 0 : index
    %17 = vector.load %arg6[%c0_12, %c0_13] : memref<128x128xbf16, #tpu.memory_space<vmem>>, vector<128x128xbf16>
    %cst_14 = arith.constant dense<0.000000e+00> : vector<8x128xf32>
    %18 = tpu.matmul %16, %17, %cst_14 {dimension_numbers = #tpu.dot_dimension_numbers<[1], [0], [0], [1], [0, 0, 1, 1], [], []>} : vector<8x128xbf16>, vector<128x128xbf16>, vector<8x128xf32> -> vector<8x128xf32>
    %c0_15 = arith.constant 0 : index
    %c0_16 = arith.constant 0 : index
    %19 = vector.load %arg7[%c0_15, %c0_16] : memref<1x128xf32, #tpu.memory_space<vmem>>, vector<1x128xf32>
    %20 = vector.broadcast %19 : vector<1x128xf32> to vector<8x128xf32>
    %21 = arith.addf %18, %20 : vector<8x128xf32>
    %c0_17 = arith.constant 0 : index
    %c0_18 = arith.constant 0 : index
    %22 = vector.load %arg8[%c0_17, %c0_18] : memref<8x128xf32, #tpu.memory_space<vmem>>, vector<8x128xf32>
    tpu.vector_store %arg8[%c0_17, %c0_18], %21 {strides = array<i32>} : memref<8x128xf32, #tpu.memory_space<vmem>>, vector<8x128xf32>,
    return
  }
  func.func @transform_0(%arg0: i32) -> (i32, i32) {
    %c0_i32 = arith.constant 0 : i32
    %c0_i32_0 = arith.constant 0 : i32
    return %arg0, %c0_i32 : i32, i32
  }
  func.func @transform_1(%arg0: i32) -> (i32, i32) {
    %c0_i32 = arith.constant 0 : i32
    %c0_i32_0 = arith.constant 0 : i32
    %c0_i32_1 = arith.constant 0 : i32
    return %c0_i32, %c0_i32_0 : i32, i32
  }
  func.func @transform_2(%arg0: i32) -> (i32, i32) {
    %c0_i32 = arith.constant 0 : i32
    %c0_i32_0 = arith.constant 0 : i32
    %c0_i32_1 = arith.constant 0 : i32
    return %c0_i32, %c0_i32_0 : i32, i32
  }
  func.func @transform_3(%arg0: i32) -> (i32, i32) {
    %c0_i32 = arith.constant 0 : i32
    %c0_i32_0 = arith.constant 0 : i32
    %c0_i32_1 = arith.constant 0 : i32
    return %c0_i32, %c0_i32_0 : i32, i32
  }
  func.func @transform_4(%arg0: i32) -> (i32, i32) {
    %c0_i32 = arith.constant 0 : i32
    %c0_i32_0 = arith.constant 0 : i32
    %c0_i32_1 = arith.constant 0 : i32
    return %c0_i32, %c0_i32_0 : i32, i32
  }
  func.func @transform_5(%arg0: i32) -> (i32, i32) {
    %c0_i32 = arith.constant 0 : i32
    %c0_i32_0 = arith.constant 0 : i32
    %c0_i32_1 = arith.constant 0 : i32
    return %c0_i32, %c0_i32_0 : i32, i32
  }
  func.func @transform_6(%arg0: i32) -> (i32, i32) {
    %c0_i32 = arith.constant 0 : i32
    %c0_i32_0 = arith.constant 0 : i32
    %c0_i32_1 = arith.constant 0 : i32
    return %c0_i32, %c0_i32_0 : i32, i32
  }
  func.func @transform_7(%arg0: i32) -> (i32, i32) {
    %c0_i32 = arith.constant 0 : i32
    %c0_i32_0 = arith.constant 0 : i32
    return %arg0, %c0_i32 : i32, i32
  }
}

</mosaic_0001>

<llo_original>
// kernel: net_forward.3
$region0: #{net_forward.3}
  #allocation0 [shape = 'u32[]', space=smem, size = 0x4, offset = 0x4, fixed_abs, tag = 'smem constant byte address 0x4 - core index']
  #allocation1 [shape = 'u32[72,128]{1,0:T(1,128)}', space=vmem, size = 0x9000, scoped, tag = 'internal scratch']
  %s0 = inlined_call_operand.vmem [shape: bf16[80,1664], index: 0, kind: input, shape index: {}]
  %s1 = inlined_call_operand.vmem [shape: bf16[6,80], index: 1, kind: input, shape index: {}]
  %s2 = inlined_call_operand.vmem [shape: f32[6,1], index: 2, kind: input, shape index: {}]
  %s3 = inlined_call_operand.vmem [shape: bf16[6,1664], index: 3, kind: output, shape index: {}]
  %s4 = sld [smem:[#allocation0]]
  $region22: #{net_forward.3} parent=0
    _
  %s6 = ssub.s32 1, %s4
  %s7 = scalar_select 0, %s6, %s4
  // Predicated region
  $region2: #{net_forward.3} parent=0 // pred_check
    _
  $region3: #{net_forward.3} parent=0 // pred_check_branch
    %9 = sbr.rel (0) target = $region5
  $region4: #{net_forward.3} parent=0 // pred_region
    _
  $region5: #{net_forward.3} parent=0 // pred_fallthru
    _
  // Predicated region
  $region6: #{net_forward.3} parent=0 // pred_check
    _
  $region7: #{net_forward.3} parent=0 // pred_check_branch
    %11 = sbr.rel (0) target = $region9
  $region8: #{net_forward.3} parent=0 // pred_region
    _
  $region9: #{net_forward.3} parent=0 // pred_fallthru
    _
  // Predicated region
  $region10: #{net_forward.3} parent=0 // pred_check
    _
  $region11: #{net_forward.3} parent=0 // pred_check_branch
    %13 = sbr.rel (0) target = $region13
  $region12: #{net_forward.3} parent=0 // pred_region
    _
  $region13: #{net_forward.3} parent=0 // pred_fallthru
    _
  %v15 = vld [vmem:[%s1] sm:$0x7]
  %v16 = vld [vmem:[%s0] sm:$0xff]
  %v17 = vld [vmem:[%s0 + $0x8] sm:$0xff]
  %v18 = vld [vmem:[%s0 + $0x10] sm:$0xff]
  %v19 = vld [vmem:[%s0 + $0x18] sm:$0xff]
  %v20 = vld [vmem:[%s0 + $0x20] sm:$0xff]
  %v21 = vld [vmem:[%s0 + $0x28] sm:$0xff]
  %v22 = vld [vmem:[%s0 + $0x30] sm:$0xf]
  %v23 = vld [vmem:[%s0 + $0x34] sm:$0xff]
  %v24 = vld [vmem:[%s0 + $0x3c] sm:$0xff]
  %v25 = vld [vmem:[%s0 + $0x44] sm:$0xff]
  %v26 = vld [vmem:[%s0 + $0x4c] sm:$0xff]
  %v27 = vld [vmem:[%s0 + $0x54] sm:$0xff]
  %v28 = vld [vmem:[%s0 + $0x5c] sm:$0xff]
  %v29 = vld [vmem:[%s0 + $0x64] sm:$0xf]
  %v30 = vld [vmem:[%s0 + $0x68] sm:$0xff]
  %v31 = vld [vmem:[%s0 + $0x70] sm:$0xff]
  %v32 = vld [vmem:[%s0 + $0x78] sm:$0xff]
  %v33 = vld [vmem:[%s0 + $0x80] sm:$0xff]
  %v34 = vld [vmem:[%s0 + $0x88] sm:$0xff]
  %v35 = vld [vmem:[%s0 + $0x90] sm:$0xff]
  %v36 = vld [vmem:[%s0 + $0x98] sm:$0xf]
  %v37 = vld [vmem:[%s0 + $0x9c] sm:$0xff]
  %v38 = vld [vmem:[%s0 + $0xa4] sm:$0xff]
  %v39 = vld [vmem:[%s0 + $0xac] sm:$0xff]
  %v40 = vld [vmem:[%s0 + $0xb4] sm:$0xff]
  %v41 = vld [vmem:[%s0 + $0xbc] sm:$0xff]
  %v42 = vld [vmem:[%s0 + $0xc4] sm:$0xff]
  %v43 = vld [vmem:[%s0 + $0xcc] sm:$0xf]
  %v44 = vld [vmem:[%s0 + $0xd0] sm:$0xff]
  %v45 = vld [vmem:[%s0 + $0xd8] sm:$0xff]
  %v46 = vld [vmem:[%s0 + $0xe0] sm:$0xff]
  %v47 = vld [vmem:[%s0 + $0xe8] sm:$0xff]
  %v48 = vld [vmem:[%s0 + $0xf0] sm:$0xff]
  %v49 = vld [vmem:[%s0 + $0xf8] sm:$0xff]
  %v50 = vld [vmem:[%s0 + $0x100] sm:$0xf]
  %v51 = vld [vmem:[%s0 + $0x104] sm:$0xff]
  %v52 = vld [vmem:[%s0 + $0x10c] sm:$0xff]
  %v53 = vld [vmem:[%s0 + $0x114] sm:$0xff]
  %v54 = vld [vmem:[%s0 + $0x11c] sm:$0xff]
  %v55 = vld [vmem:[%s0 + $0x124] sm:$0xff]
  %v56 = vld [vmem:[%s0 + $0x12c] sm:$0xff]
  %v57 = vld [vmem:[%s0 + $0x134] sm:$0xf]
  %v58 = vld [vmem:[%s0 + $0x138] sm:$0xff]
  %v59 = vld [vmem:[%s0 + $0x140] sm:$0xff]
  %v60 = vld [vmem:[%s0 + $0x148] sm:$0xff]
  %v61 = vld [vmem:[%s0 + $0x150] sm:$0xff]
  %v62 = vld [vmem:[%s0 + $0x158] sm:$0xff]
  %v63 = vld [vmem:[%s0 + $0x160] sm:$0xff]
  %v64 = vld [vmem:[%s0 + $0x168] sm:$0xf]
  %v65 = vld [vmem:[%s0 + $0x16c] sm:$0xff]
  %v66 = vld [vmem:[%s0 + $0x174] sm:$0xff]
  %v67 = vld [vmem:[%s0 + $0x17c] sm:$0xff]
  %v68 = vld [vmem:[%s0 + $0x184] sm:$0xff]
  %v69 = vld [vmem:[%s0 + $0x18c] sm:$0xff]
  %v70 = vld [vmem:[%s0 + $0x194] sm:$0xff]
  %v71 = vld [vmem:[%s0 + $0x19c] sm:$0xf]
  %v72 = vld [vmem:[%s0 + $0x1a0] sm:$0xff]
  %v73 = vld [vmem:[%s0 + $0x1a8] sm:$0xff]
  %v74 = vld [vmem:[%s0 + $0x1b0] sm:$0xff]
  %v75 = vld [vmem:[%s0 + $0x1b8] sm:$0xff]
  %v76 = vld [vmem:[%s0 + $0x1c0] sm:$0xff]
  %v77 = vld [vmem:[%s0 + $0x1c8] sm:$0xff]
  %v78 = vld [vmem:[%s0 + $0x1d0] sm:$0xf]
  %v79 = vld [vmem:[%s0 + $0x1d4] sm:$0xff]
  %v80 = vld [vmem:[%s0 + $0x1dc] sm:$0xff]
  %v81 = vld [vmem:[%s0 + $0x1e4] sm:$0xff]
  %v82 = vld [vmem:[%s0 + $0x1ec] sm:$0xff]
  %v83 = vld [vmem:[%s0 + $0x1f4] sm:$0xff]
  %v84 = vld [vmem:[%s0 + $0x1fc] sm:$0xff]
  %v85 = vld [vmem:[%s0 + $0x204] sm:$0xf]
  %v86 = vld [vmem:[%s2] sm:$0x3f]
  %88 = vset.pattern.permute.xlu0 0
  %89 = vperm.xlu0 %88, %v86
  %v90 = vpop.permute.xlu0 %89
  %v162 = vunpack.c.l.b16 %v16
  %v163 = vunpack.c.h.b16 %v16
  %v164 = vunpack.c.l.b16 %v17
  %v165 = vunpack.c.h.b16 %v17
  %v166 = vunpack.c.l.b16 %v18
  %v167 = vunpack.c.h.b16 %v18
  %v168 = vunpack.c.l.b16 %v19
  %v169 = vunpack.c.h.b16 %v19
  %v170 = vunpack.c.l.b16 %v20
  %v171 = vunpack.c.h.b16 %v20
  %v172 = vunpack.c.l.b16 %v21
  %v173 = vunpack.c.h.b16 %v21
  %v174 = vunpack.c.l.b16 %v22
  %v175 = vunpack.c.l.b16 %v23
  %v176 = vunpack.c.h.b16 %v23
  %v177 = vunpack.c.l.b16 %v24
  %v178 = vunpack.c.h.b16 %v24
  %v179 = vunpack.c.l.b16 %v25
  %v180 = vunpack.c.h.b16 %v25
  %v181 = vunpack.c.l.b16 %v26
  %v182 = vunpack.c.h.b16 %v26
  %v183 = vunpack.c.l.b16 %v27
  %v184 = vunpack.c.h.b16 %v27
  %v185 = vunpack.c.l.b16 %v28
  %v186 = vunpack.c.h.b16 %v28
  %v187 = vunpack.c.l.b16 %v29
  %v188 = vunpack.c.l.b16 %v30
  %v189 = vunpack.c.h.b16 %v30
  %v190 = vunpack.c.l.b16 %v31
  %v191 = vunpack.c.h.b16 %v31
  %v192 = vunpack.c.l.b16 %v32
  %v193 = vunpack.c.h.b16 %v32
  %v194 = vunpack.c.l.b16 %v33
  %v195 = vunpack.c.h.b16 %v33
  %v196 = vunpack.c.l.b16 %v34
  %v197 = vunpack.c.h.b16 %v34
  %v198 = vunpack.c.l.b16 %v35
  %v199 = vunpack.c.h.b16 %v35
  %v200 = vunpack.c.l.b16 %v36
  %v201 = vunpack.c.l.b16 %v37
  %v202 = vunpack.c.h.b16 %v37
  %v203 = vunpack.c.l.b16 %v38
  %v204 = vunpack.c.h.b16 %v38
  %v205 = vunpack.c.l.b16 %v39
  %v206 = vunpack.c.h.b16 %v39
  %v207 = vunpack.c.l.b16 %v40
  %v208 = vunpack.c.h.b16 %v40
  %v209 = vunpack.c.l.b16 %v41
  %v210 = vunpack.c.h.b16 %v41
  %v211 = vunpack.c.l.b16 %v42
  %v212 = vunpack.c.h.b16 %v42
  %v213 = vunpack.c.l.b16 %v43
  %v214 = vunpack.c.l.b16 %v44
  %v215 = vunpack.c.h.b16 %v44
  %v216 = vunpack.c.l.b16 %v45
  %v217 = vunpack.c.h.b16 %v45
  %v218 = vunpack.c.l.b16 %v46
  %v219 = vunpack.c.h.b16 %v46
  %v220 = vunpack.c.l.b16 %v47
  %v221 = vunpack.c.h.b16 %v47
  %v222 = vunpack.c.l.b16 %v48
  %v223 = vunpack.c.h.b16 %v48
  %v224 = vunpack.c.l.b16 %v49
  %v225 = vunpack.c.h.b16 %v49
  %v226 = vunpack.c.l.b16 %v50
  %v227 = vunpack.c.l.b16 %v51
  %v228 = vunpack.c.h.b16 %v51
  %v229 = vunpack.c.l.b16 %v52
  %v230 = vunpack.c.h.b16 %v52
  %v231 = vunpack.c.l.b16 %v53
  %v232 = vunpack.c.h.b16 %v53
  %v233 = vunpack.c.l.b16 %v54
  %v234 = vunpack.c.h.b16 %v54
  %v235 = vunpack.c.l.b16 %v55
  %v236 = vunpack.c.h.b16 %v55
  %v237 = vunpack.c.l.b16 %v56
  %v238 = vunpack.c.h.b16 %v56
  %v239 = vunpack.c.l.b16 %v57
  %v240 = vunpack.c.l.b16 %v58
  %v241 = vunpack.c.h.b16 %v58
  %v242 = vunpack.c.l.b16 %v59
  %v243 = vunpack.c.h.b16 %v59
  %v244 = vunpack.c.l.b16 %v60
  %v245 = vunpack.c.h.b16 %v60
  %v246 = vunpack.c.l.b16 %v61
  %v247 = vunpack.c.h.b16 %v61
  %v248 = vunpack.c.l.b16 %v62
  %v249 = vunpack.c.h.b16 %v62
  %v250 = vunpack.c.l.b16 %v63
  %v251 = vunpack.c.h.b16 %v63
  %v252 = vunpack.c.l.b16 %v64
  %v253 = vunpack.c.l.b16 %v65
  %v254 = vunpack.c.h.b16 %v65
  %v255 = vunpack.c.l.b16 %v66
  %v256 = vunpack.c.h.b16 %v66
  %v257 = vunpack.c.l.b16 %v67
  %v258 = vunpack.c.h.b16 %v67
  %v259 = vunpack.c.l.b16 %v68
  %v260 = vunpack.c.h.b16 %v68
  %v261 = vunpack.c.l.b16 %v69
  %v262 = vunpack.c.h.b16 %v69
  %v263 = vunpack.c.l.b16 %v70
  %v264 = vunpack.c.h.b16 %v70
  %v265 = vunpack.c.l.b16 %v71
  %v266 = vunpack.c.l.b16 %v72
  %v267 = vunpack.c.h.b16 %v72
  %v268 = vunpack.c.l.b16 %v73
  %v269 = vunpack.c.h.b16 %v73
  %v270 = vunpack.c.l.b16 %v74
  %v271 = vunpack.c.h.b16 %v74
  %v272 = vunpack.c.l.b16 %v75
  %v273 = vunpack.c.h.b16 %v75
  %v274 = vunpack.c.l.b16 %v76
  %v275 = vunpack.c.h.b16 %v76
  %v276 = vunpack.c.l.b16 %v77
  %v277 = vunpack.c.h.b16 %v77
  %v278 = vunpack.c.l.b16 %v78
  %v279 = vunpack.c.l.b16 %v79
  %v280 = vunpack.c.h.b16 %v79
  %v281 = vunpack.c.l.b16 %v80
  %v282 = vunpack.c.h.b16 %v80
  %v283 = vunpack.c.l.b16 %v81
  %v284 = vunpack.c.h.b16 %v81
  %v285 = vunpack.c.l.b16 %v82
  %v286 = vunpack.c.h.b16 %v82
  %v287 = vunpack.c.l.b16 %v83
  %v288 = vunpack.c.h.b16 %v83
  %v289 = vunpack.c.l.b16 %v84
  %v290 = vunpack.c.h.b16 %v84
  %v291 = vunpack.c.l.b16 %v85
  %v292 = vpack.c.b16 %v175, %v162
  %v293 = vpack.c.b16 %v176, %v163
  %v294 = vpack.c.b16 %v177, %v164
  %v295 = vpack.c.b16 %v178, %v165
  %v296 = vpack.c.b16 %v179, %v166
  %v297 = vpack.c.b16 %v180, %v167
  %v298 = vpack.c.b16 %v181, %v168
  %v299 = vpack.c.b16 %v182, %v169
  %v300 = vpack.c.b16 %v183, %v170
  %v301 = vpack.c.b16 %v184, %v171
  %v302 = vpack.c.b16 %v185, %v172
  %v303 = vpack.c.b16 %v186, %v173
  %v304 = vpack.c.b16 %v187, %v174
  %v305 = vpack.c.b16 %v201, %v188
  %v306 = vpack.c.b16 %v202, %v189
  %v307 = vpack.c.b16 %v203, %v190
  %v308 = vpack.c.b16 %v204, %v191
  %v309 = vpack.c.b16 %v205, %v192
  %v310 = vpack.c.b16 %v206, %v193
  %v311 = vpack.c.b16 %v207, %v194
  %v312 = vpack.c.b16 %v208, %v195
  %v313 = vpack.c.b16 %v209, %v196
  %v314 = vpack.c.b16 %v210, %v197
  %v315 = vpack.c.b16 %v211, %v198
  %v316 = vpack.c.b16 %v212, %v199
  %v317 = vpack.c.b16 %v213, %v200
  %v318 = vpack.c.b16 %v227, %v214
  %v319 = vpack.c.b16 %v228, %v215
  %v320 = vpack.c.b16 %v229, %v216
  %v321 = vpack.c.b16 %v230, %v217
  %v322 = vpack.c.b16 %v231, %v218
  %v323 = vpack.c.b16 %v232, %v219
  %v324 = vpack.c.b16 %v233, %v220
  %v325 = vpack.c.b16 %v234, %v221
  %v326 = vpack.c.b16 %v235, %v222
  %v327 = vpack.c.b16 %v236, %v223
  %v328 = vpack.c.b16 %v237, %v224
  %v329 = vpack.c.b16 %v238, %v225
  %v330 = vpack.c.b16 %v239, %v226
  %v331 = vpack.c.b16 %v253, %v240
  %v332 = vpack.c.b16 %v254, %v241
  %v333 = vpack.c.b16 %v255, %v242
  %v334 = vpack.c.b16 %v256, %v243
  %v335 = vpack.c.b16 %v257, %v244
  %v336 = vpack.c.b16 %v258, %v245
  %v337 = vpack.c.b16 %v259, %v246
  %v338 = vpack.c.b16 %v260, %v247
  %v339 = vpack.c.b16 %v261, %v248
  %v340 = vpack.c.b16 %v262, %v249
  %v341 = vpack.c.b16 %v263, %v250
  %v342 = vpack.c.b16 %v264, %v251
  %v343 = vpack.c.b16 %v265, %v252
  %v344 = vpack.c.b16 %v279, %v266
  %v345 = vpack.c.b16 %v280, %v267
  %v346 = vpack.c.b16 %v281, %v268
  %v347 = vpack.c.b16 %v282, %v269
  %v348 = vpack.c.b16 %v283, %v270
  %v349 = vpack.c.b16 %v284, %v271
  %v350 = vpack.c.b16 %v285, %v272
  %v351 = vpack.c.b16 %v286, %v273
  %v352 = vpack.c.b16 %v287, %v274
  %v353 = vpack.c.b16 %v288, %v275
  %v354 = vpack.c.b16 %v289, %v276
  %v355 = vpack.c.b16 %v290, %v277
  %v356 = vpack.c.b16 %v291, %v278
  %vm422 = vcmask 654336
  %v424 = vsel %vm422, %v15, 0
  %426 = vmatpush.bf16.msra.mxu0 0
  %427 = vmatpush.bf16.msra.mxu0 0
  %428 = vmatpush.bf16.msra.mxu0 0
  %429 = vmatpush.bf16.msra.mxu0 %v344
  %430 = vmatpush.bf16.msra.mxu0 %v331
  %431 = vmatpush.bf16.msra.mxu0 %v318
  %432 = vmatpush.bf16.msra.mxu0 %v305
  %433 = vmatpush.bf16.msra.mxu0 %v292
  %434 = vmatmul.bf16.gmra.mxu0 %v424
  %v435 = vpop.f32.mrf.mxu0
  %v436 = vadd.f32 %v90, %v435
  %v437 = vpop.f32.mrf.mxu0
  %438 = vdwg.mxu0
  %439 = vmatpush.bf16.msra.mxu0 0
  %440 = vmatpush.bf16.msra.mxu0 0
  %441 = vmatpush.bf16.msra.mxu0 0
  %442 = vmatpush.bf16.msra.mxu0 %v345
  %443 = vmatpush.bf16.msra.mxu0 %v332
  %444 = vmatpush.bf16.msra.mxu0 %v319
  %445 = vmatpush.bf16.msra.mxu0 %v306
  %446 = vmatpush.bf16.msra.mxu0 %v293
  %447 = vmatmul.bf16.gmra.mxu0 %v424
  %v448 = vpop.f32.mrf.mxu0
  %v449 = vadd.f32 %v90, %v448
  %v450 = vpop.f32.mrf.mxu0
  %451 = vdwg.mxu0
  %452 = vmatpush.bf16.msra.mxu0 0
  %453 = vmatpush.bf16.msra.mxu0 0
  %454 = vmatpush.bf16.msra.mxu0 0
  %455 = vmatpush.bf16.msra.mxu0 %v346
  %456 = vmatpush.bf16.msra.mxu0 %v333
  %457 = vmatpush.bf16.msra.mxu0 %v320
  %458 = vmatpush.bf16.msra.mxu0 %v307
  %459 = vmatpush.bf16.msra.mxu0 %v294
  %460 = vmatmul.bf16.gmra.mxu0 %v424
  %v461 = vpop.f32.mrf.mxu0
  %v462 = vadd.f32 %v90, %v461
  %v463 = vpop.f32.mrf.mxu0
  %464 = vdwg.mxu0
  %465 = vmatpush.bf16.msra.mxu0 0
  %466 = vmatpush.bf16.msra.mxu0 0
  %467 = vmatpush.bf16.msra.mxu0 0
  %468 = vmatpush.bf16.msra.mxu0 %v347
  %469 = vmatpush.bf16.msra.mxu0 %v334
  %470 = vmatpush.bf16.msra.mxu0 %v321
  %471 = vmatpush.bf16.msra.mxu0 %v308
  %472 = vmatpush.bf16.msra.mxu0 %v295
  %473 = vmatmul.bf16.gmra.mxu0 %v424
  %v474 = vpop.f32.mrf.mxu0
  %v475 = vadd.f32 %v90, %v474
  %v476 = vpop.f32.mrf.mxu0
  %477 = vdwg.mxu0
  %478 = vmatpush.bf16.msra.mxu0 0
  %479 = vmatpush.bf16.msra.mxu0 0
  %480 = vmatpush.bf16.msra.mxu0 0
  %481 = vmatpush.bf16.msra.mxu0 %v348
  %482 = vmatpush.bf16.msra.mxu0 %v335
  %483 = vmatpush.bf16.msra.mxu0 %v322
  %484 = vmatpush.bf16.msra.mxu0 %v309
  %485 = vmatpush.bf16.msra.mxu0 %v296
  %486 = vmatmul.bf16.gmra.mxu0 %v424
  %v487 = vpop.f32.mrf.mxu0
  %v488 = vadd.f32 %v90, %v487
  %v489 = vpop.f32.mrf.mxu0
  %490 = vdwg.mxu0
  %491 = vmatpush.bf16.msra.mxu0 0
  %492 = vmatpush.bf16.msra.mxu0 0
  %493 = vmatpush.bf16.msra.mxu0 0
  %494 = vmatpush.bf16.msra.mxu0 %v349
  %495 = vmatpush.bf16.msra.mxu0 %v336
  %496 = vmatpush.bf16.msra.mxu0 %v323
  %497 = vmatpush.bf16.msra.mxu0 %v310
  %498 = vmatpush.bf16.msra.mxu0 %v297
  %499 = vmatmul.bf16.gmra.mxu0 %v424
  %v500 = vpop.f32.mrf.mxu0
  %v501 = vadd.f32 %v90, %v500
  %v502 = vpop.f32.mrf.mxu0
  %503 = vdwg.mxu0
  %504 = vmatpush.bf16.msra.mxu0 0
  %505 = vmatpush.bf16.msra.mxu0 0
  %506 = vmatpush.bf16.msra.mxu0 0
  %507 = vmatpush.bf16.msra.mxu0 %v350
  %508 = vmatpush.bf16.msra.mxu0 %v337
  %509 = vmatpush.bf16.msra.mxu0 %v324
  %510 = vmatpush.bf16.msra.mxu0 %v311
  %511 = vmatpush.bf16.msra.mxu0 %v298
  %512 = vmatmul.bf16.gmra.mxu0 %v424
  %v513 = vpop.f32.mrf.mxu0
  %v514 = vadd.f32 %v90, %v513
  %v515 = vpop.f32.mrf.mxu0
  %516 = vdwg.mxu0
  %517 = vmatpush.bf16.msra.mxu0 0
  %518 = vmatpush.bf16.msra.mxu0 0
  %519 = vmatpush.bf16.msra.mxu0 0
  %520 = vmatpush.bf16.msra.mxu0 %v351
  %521 = vmatpush.bf16.msra.mxu0 %v338
  %522 = vmatpush.bf16.msra.mxu0 %v325
  %523 = vmatpush.bf16.msra.mxu0 %v312
  %524 = vmatpush.bf16.msra.mxu0 %v299
  %525 = vmatmul.bf16.gmra.mxu0 %v424
  %v526 = vpop.f32.mrf.mxu0
  %v527 = vadd.f32 %v90, %v526
  %v528 = vpop.f32.mrf.mxu0
  %529 = vdwg.mxu0
  %530 = vmatpush.bf16.msra.mxu0 0
  %531 = vmatpush.bf16.msra.mxu0 0
  %532 = vmatpush.bf16.msra.mxu0 0
  %533 = vmatpush.bf16.msra.mxu0 %v352
  %534 = vmatpush.bf16.msra.mxu0 %v339
  %535 = vmatpush.bf16.msra.mxu0 %v326
  %536 = vmatpush.bf16.msra.mxu0 %v313
  %537 = vmatpush.bf16.msra.mxu0 %v300
  %538 = vmatmul.bf16.gmra.mxu0 %v424
  %v539 = vpop.f32.mrf.mxu0
  %v540 = vadd.f32 %v90, %v539
  %v541 = vpop.f32.mrf.mxu0
  %542 = vdwg.mxu0
  %543 = vmatpush.bf16.msra.mxu0 0
  %544 = vmatpush.bf16.msra.mxu0 0
  %545 = vmatpush.bf16.msra.mxu0 0
  %546 = vmatpush.bf16.msra.mxu0 %v353
  %547 = vmatpush.bf16.msra.mxu0 %v340
  %548 = vmatpush.bf16.msra.mxu0 %v327
  %549 = vmatpush.bf16.msra.mxu0 %v314
  %550 = vmatpush.bf16.msra.mxu0 %v301
  %551 = vmatmul.bf16.gmra.mxu0 %v424
  %v552 = vpop.f32.mrf.mxu0
  %v553 = vadd.f32 %v90, %v552
  %v554 = vpop.f32.mrf.mxu0
  %555 = vdwg.mxu0
  %556 = vmatpush.bf16.msra.mxu0 0
  %557 = vmatpush.bf16.msra.mxu0 0
  %558 = vmatpush.bf16.msra.mxu0 0
  %559 = vmatpush.bf16.msra.mxu0 %v354
  %560 = vmatpush.bf16.msra.mxu0 %v341
  %561 = vmatpush.bf16.msra.mxu0 %v328
  %562 = vmatpush.bf16.msra.mxu0 %v315
  %563 = vmatpush.bf16.msra.mxu0 %v302
  %564 = vmatmul.bf16.gmra.mxu0 %v424
  %v565 = vpop.f32.mrf.mxu0
  %v566 = vadd.f32 %v90, %v565
  %v567 = vpop.f32.mrf.mxu0
  %568 = vdwg.mxu0
  %569 = vmatpush.bf16.msra.mxu0 0
  %570 = vmatpush.bf16.msra.mxu0 0
  %571 = vmatpush.bf16.msra.mxu0 0
  %572 = vmatpush.bf16.msra.mxu0 %v355
  %573 = vmatpush.bf16.msra.mxu0 %v342
  %574 = vmatpush.bf16.msra.mxu0 %v329
  %575 = vmatpush.bf16.msra.mxu0 %v316
  %576 = vmatpush.bf16.msra.mxu0 %v303
  %577 = vmatmul.bf16.gmra.mxu0 %v424
  %v578 = vpop.f32.mrf.mxu0
  %v579 = vadd.f32 %v90, %v578
  %v580 = vpop.f32.mrf.mxu0
  %581 = vdwg.mxu0
  %582 = vmatpush.bf16.msra.mxu0 0
  %583 = vmatpush.bf16.msra.mxu0 0
  %584 = vmatpush.bf16.msra.mxu0 0
  %585 = vmatpush.bf16.msra.mxu0 %v356
  %586 = vmatpush.bf16.msra.mxu0 %v343
  %587 = vmatpush.bf16.msra.mxu0 %v330
  %588 = vmatpush.bf16.msra.mxu0 %v317
  %589 = vmatpush.bf16.msra.mxu0 %v304
  %590 = vmatmul.bf16.gmra.mxu0 %v424
  %v591 = vpop.f32.mrf.mxu0
  %v592 = vadd.f32 %v90, %v591
  %v593 = vpop.f32.mrf.mxu0
  %594 = vdwg.mxu0
  %v595 = vmax.f32 %v436, 0.0
  %v596 = vmax.f32 %v449, 0.0
  %v597 = vmax.f32 %v462, 0.0
  %v598 = vmax.f32 %v475, 0.0
  %v599 = vmax.f32 %v488, 0.0
  %v600 = vmax.f32 %v501, 0.0
  %v601 = vmax.f32 %v514, 0.0
  %v602 = vmax.f32 %v527, 0.0
  %v603 = vmax.f32 %v540, 0.0
  %v604 = vmax.f32 %v553, 0.0
  %v605 = vmax.f32 %v566, 0.0
  %v606 = vmax.f32 %v579, 0.0
  %v607 = vmax.f32 %v592, 0.0
  %v608 = vpack.c.bf16 %v596, %v595
  %v609 = vpack.c.bf16 %v598, %v597
  %v610 = vpack.c.bf16 %v600, %v599
  %v611 = vpack.c.bf16 %v602, %v601
  %v612 = vpack.c.bf16 %v604, %v603
  %v613 = vpack.c.bf16 %v606, %v605
  %v614 = vpack.c.bf16 %v607, %v607
  %615 = vst [vmem:[%s3] sm:$0x77] %v608
  %616 = vst [vmem:[%s3 + $0x8] sm:$0x77] %v609
  %617 = vst [vmem:[%s3 + $0x10] sm:$0x77] %v610
  %618 = vst [vmem:[%s3 + $0x18] sm:$0x77] %v611
  %619 = vst [vmem:[%s3 + $0x20] sm:$0x77] %v612
  %620 = vst [vmem:[%s3 + $0x28] sm:$0x77] %v613
  %621 = vst [vmem:[%s3 + $0x30] sm:$0x7] %v614
  // Predicated region
  $region14: #{net_forward.3} parent=0 // pred_check
    _
  $region15: #{net_forward.3} parent=0 // pred_check_branch
    %623 = sbr.rel (0) target = $region17
  $region16: #{net_forward.3} parent=0 // pred_region
    _
  $region17: #{net_forward.3} parent=0 // pred_fallthru
    _
  // Predicated region
  $region18: #{net_forward.3} parent=0 // pred_check
    _
  $region19: #{net_forward.3} parent=0 // pred_check_branch
    %625 = sbr.rel (0) target = $region21
  $region20: #{net_forward.3} parent=0 // pred_region
    _
  $region21: #{net_forward.3} parent=0 // pred_fallthru
    _

// kernel: net_forward.4
$region0: #{net_forward.4}
  #allocation0 [shape = 'u32[]', space=smem, size = 0x4, offset = 0x4, fixed_abs, tag = 'smem constant byte address 0x4 - core index']
  #allocation1 [shape = 'u32[72,128]{1,0:T(1,128)}', space=vmem, size = 0x9000, scoped, tag = 'internal scratch']
  %s0 = inlined_call_operand.vmem [shape: bf16[160,256], index: 0, kind: input, shape index: {}]
  %s1 = inlined_call_operand.vmem [shape: bf16[16,160], index: 1, kind: input, shape index: {}]
  %s2 = inlined_call_operand.vmem [shape: f32[16,1], index: 2, kind: input, shape index: {}]
  %s3 = inlined_call_operand.vmem [shape: bf16[16,256], index: 3, kind: output, shape index: {}]
  %s4 = sld [smem:[#allocation0]]
  $region22: #{net_forward.4} parent=0
    _
  %s6 = ssub.s32 1, %s4
  %s7 = scalar_select 0, %s6, %s4
  // Predicated region
  $region2: #{net_forward.4} parent=0 // pred_check
    _
  $region3: #{net_forward.4} parent=0 // pred_check_branch
    %9 = sbr.rel (0) target = $region5
  $region4: #{net_forward.4} parent=0 // pred_region
    _
  $region5: #{net_forward.4} parent=0 // pred_fallthru
    _
  // Predicated region
  $region6: #{net_forward.4} parent=0 // pred_check
    _
  $region7: #{net_forward.4} parent=0 // pred_check_branch
    %11 = sbr.rel (0) target = $region9
  $region8: #{net_forward.4} parent=0 // pred_region
    _
  $region9: #{net_forward.4} parent=0 // pred_fallthru
    _
  // Predicated region
  $region10: #{net_forward.4} parent=0 // pred_check
    _
  $region11: #{net_forward.4} parent=0 // pred_check_branch
    %13 = sbr.rel (0) target = $region13
  $region12: #{net_forward.4} parent=0 // pred_region
    _
  $region13: #{net_forward.4} parent=0 // pred_fallthru
    _
  %v15 = vld [vmem:[%s1] sm:$0xff]
  %v16 = vld [vmem:[%s1 + $0x8] sm:$0xff]
  %v17 = vld [vmem:[%s0] sm:$0xff]
  %v18 = vld [vmem:[%s0 + $0x8] sm:$0xff]
  %v19 = vld [vmem:[%s0 + $0x10] sm:$0xff]
  %v20 = vld [vmem:[%s0 + $0x18] sm:$0xff]
  %v21 = vld [vmem:[%s0 + $0x20] sm:$0xff]
  %v22 = vld [vmem:[%s0 + $0x28] sm:$0xff]
  %v23 = vld [vmem:[%s0 + $0x30] sm:$0xff]
  %v24 = vld [vmem:[%s0 + $0x38] sm:$0xff]
  %v25 = vld [vmem:[%s0 + $0x40] sm:$0xff]
  %v26 = vld [vmem:[%s0 + $0x48] sm:$0xff]
  %v27 = vld [vmem:[%s0 + $0x50] sm:$0xff]
  %v28 = vld [vmem:[%s0 + $0x58] sm:$0xff]
  %v29 = vld [vmem:[%s0 + $0x60] sm:$0xff]
  %v30 = vld [vmem:[%s0 + $0x68] sm:$0xff]
  %v31 = vld [vmem:[%s0 + $0x70] sm:$0xff]
  %v32 = vld [vmem:[%s0 + $0x78] sm:$0xff]
  %v33 = vld [vmem:[%s0 + $0x80] sm:$0xff]
  %v34 = vld [vmem:[%s0 + $0x88] sm:$0xff]
  %v35 = vld [vmem:[%s0 + $0x90] sm:$0xff]
  %v36 = vld [vmem:[%s0 + $0x98] sm:$0xff]
  %v37 = vld [vmem:[%s2] sm:$0xff]
  %v38 = vld [vmem:[%s2 + $0x8] sm:$0xff]
  %40 = vset.pattern.permute.xlu0 0
  %41 = vperm.xlu0 %40, %v37
  %v42 = vpop.permute.xlu0 %41
  %45 = vset.pattern.permute.xlu0 0
  %46 = vperm.xlu0 %45, %v38
  %v47 = vpop.permute.xlu0 %46
  %v51 = vunpack.c.l.b16 %v15
  %v52 = vunpack.c.h.b16 %v15
  %v53 = vunpack.c.l.b16 %v16
  %v54 = vunpack.c.h.b16 %v16
  %v55 = vpack.c.b16 %v53, %v51
  %v56 = vpack.c.b16 %v54, %v52
  %v78 = vunpack.c.l.b16 %v17
  %v79 = vunpack.c.h.b16 %v17
  %v80 = vunpack.c.l.b16 %v18
  %v81 = vunpack.c.h.b16 %v18
  %v82 = vunpack.c.l.b16 %v19
  %v83 = vunpack.c.h.b16 %v19
  %v84 = vunpack.c.l.b16 %v20
  %v85 = vunpack.c.h.b16 %v20
  %v86 = vunpack.c.l.b16 %v21
  %v87 = vunpack.c.h.b16 %v21
  %v88 = vunpack.c.l.b16 %v22
  %v89 = vunpack.c.h.b16 %v22
  %v90 = vunpack.c.l.b16 %v23
  %v91 = vunpack.c.h.b16 %v23
  %v92 = vunpack.c.l.b16 %v24
  %v93 = vunpack.c.h.b16 %v24
  %v94 = vunpack.c.l.b16 %v25
  %v95 = vunpack.c.h.b16 %v25
  %v96 = vunpack.c.l.b16 %v26
  %v97 = vunpack.c.h.b16 %v26
  %v98 = vunpack.c.l.b16 %v27
  %v99 = vunpack.c.h.b16 %v27
  %v100 = vunpack.c.l.b16 %v28
  %v101 = vunpack.c.h.b16 %v28
  %v102 = vunpack.c.l.b16 %v29
  %v103 = vunpack.c.h.b16 %v29
  %v104 = vunpack.c.l.b16 %v30
  %v105 = vunpack.c.h.b16 %v30
  %v106 = vunpack.c.l.b16 %v31
  %v107 = vunpack.c.h.b16 %v31
  %v108 = vunpack.c.l.b16 %v32
  %v109 = vunpack.c.h.b16 %v32
  %v110 = vunpack.c.l.b16 %v33
  %v111 = vunpack.c.h.b16 %v33
  %v112 = vunpack.c.l.b16 %v34
  %v113 = vunpack.c.h.b16 %v34
  %v114 = vunpack.c.l.b16 %v35
  %v115 = vunpack.c.h.b16 %v35
  %v116 = vunpack.c.l.b16 %v36
  %v117 = vunpack.c.h.b16 %v36
  %v118 = vpack.c.b16 %v80, %v78
  %v119 = vpack.c.b16 %v81, %v79
  %v120 = vpack.c.b16 %v84, %v82
  %v121 = vpack.c.b16 %v85, %v83
  %v122 = vpack.c.b16 %v88, %v86
  %v123 = vpack.c.b16 %v89, %v87
  %v124 = vpack.c.b16 %v92, %v90
  %v125 = vpack.c.b16 %v93, %v91
  %v126 = vpack.c.b16 %v96, %v94
  %v127 = vpack.c.b16 %v97, %v95
  %v128 = vpack.c.b16 %v100, %v98
  %v129 = vpack.c.b16 %v101, %v99
  %v130 = vpack.c.b16 %v104, %v102
  %v131 = vpack.c.b16 %v105, %v103
  %v132 = vpack.c.b16 %v108, %v106
  %v133 = vpack.c.b16 %v109, %v107
  %v134 = vpack.c.b16 %v112, %v110
  %v135 = vpack.c.b16 %v113, %v111
  %v136 = vpack.c.b16 %v116, %v114
  %v137 = vpack.c.b16 %v117, %v115
  %vm158 = vcmask 261120
  %v160 = vsel %vm158, %v56, 0
  %162 = vmatpush.bf16.msra.mxu0 %v132
  %163 = vmatpush.bf16.msra.mxu0 %v130
  %164 = vmatpush.bf16.msra.mxu0 %v128
  %165 = vmatpush.bf16.msra.mxu0 %v126
  %166 = vmatpush.bf16.msra.mxu0 %v124
  %167 = vmatpush.bf16.msra.mxu0 %v122
  %168 = vmatpush.bf16.msra.mxu0 %v120
  %169 = vmatpush.bf16.msra.mxu0 %v118
  %170 = vmatmul.bf16.gmra.mxu0 %v55
  %v171 = vpop.f32.mrf.mxu0
  %v172 = vadd.f32 %v42, %v171
  %v173 = vpop.f32.mrf.mxu0
  %v174 = vadd.f32 %v47, %v173
  %175 = vdwg.mxu0
  %176 = vmatpush.bf16.msra.mxu0 0
  %177 = vmatpush.bf16.msra.mxu0 0
  %178 = vmatpush.bf16.msra.mxu0 0
  %179 = vmatpush.bf16.msra.mxu0 0
  %180 = vmatpush.bf16.msra.mxu0 0
  %181 = vmatpush.bf16.msra.mxu0 0
  %182 = vmatpush.bf16.msra.mxu0 %v136
  %183 = vmatpush.bf16.msra.mxu0 %v134
  %184 = vmatmul.bf16.gmra.mxu0 %v160
  %v185 = vpop.f32.mrf.mxu0
  %v186 = vadd.f32 %v172, %v185
  %v187 = vpop.f32.mrf.mxu0
  %v188 = vadd.f32 %v174, %v187
  %189 = vdwg.mxu0
  %190 = vmatpush.bf16.msra.mxu0 %v133
  %191 = vmatpush.bf16.msra.mxu0 %v131
  %192 = vmatpush.bf16.msra.mxu0 %v129
  %193 = vmatpush.bf16.msra.mxu0 %v127
  %194 = vmatpush.bf16.msra.mxu0 %v125
  %195 = vmatpush.bf16.msra.mxu0 %v123
  %196 = vmatpush.bf16.msra.mxu0 %v121
  %197 = vmatpush.bf16.msra.mxu0 %v119
  %198 = vmatmul.bf16.gmra.mxu0 %v55
  %v199 = vpop.f32.mrf.mxu0
  %v200 = vadd.f32 %v42, %v199
  %v201 = vpop.f32.mrf.mxu0
  %v202 = vadd.f32 %v47, %v201
  %203 = vdwg.mxu0
  %204 = vmatpush.bf16.msra.mxu0 0
  %205 = vmatpush.bf16.msra.mxu0 0
  %206 = vmatpush.bf16.msra.mxu0 0
  %207 = vmatpush.bf16.msra.mxu0 0
  %208 = vmatpush.bf16.msra.mxu0 0
  %209 = vmatpush.bf16.msra.mxu0 0
  %210 = vmatpush.bf16.msra.mxu0 %v137
  %211 = vmatpush.bf16.msra.mxu0 %v135
  %212 = vmatmul.bf16.gmra.mxu0 %v160
  %v213 = vpop.f32.mrf.mxu0
  %v214 = vadd.f32 %v200, %v213
  %v215 = vpop.f32.mrf.mxu0
  %v216 = vadd.f32 %v202, %v215
  %217 = vdwg.mxu0
  %v218 = vmax.f32 %v186, 0.0
  %v219 = vmax.f32 %v214, 0.0
  %v220 = vmax.f32 %v188, 0.0
  %v221 = vmax.f32 %v216, 0.0
  %v222 = vpack.c.bf16 %v219, %v218
  %v223 = vpack.c.bf16 %v221, %v220
  %224 = vst [vmem:[%s3] sm:$0xff] %v222
  %225 = vst [vmem:[%s3 + $0x8] sm:$0xff] %v223
  // Predicated region
  $region14: #{net_forward.4} parent=0 // pred_check
    _
  $region15: #{net_forward.4} parent=0 // pred_check_branch
    %227 = sbr.rel (0) target = $region17
  $region16: #{net_forward.4} parent=0 // pred_region
    _
  $region17: #{net_forward.4} parent=0 // pred_fallthru
    _
  // Predicated region
  $region18: #{net_forward.4} parent=0 // pred_check
    _
  $region19: #{net_forward.4} parent=0 // pred_check_branch
    %229 = sbr.rel (0) target = $region21
  $region20: #{net_forward.4} parent=0 // pred_region
    _
  $region21: #{net_forward.4} parent=0 // pred_fallthru
    _

// kernel: net_forward.5
$region0: #{net_forward.5}
  #allocation0 [shape = 'u32[]', space=smem, size = 0x4, offset = 0x4, fixed_abs, tag = 'smem constant byte address 0x4 - core index']
  #allocation1 [shape = 'u32[72,128]{1,0:T(1,128)}', space=vmem, size = 0x9000, scoped, tag = 'internal scratch']
  %s0 = inlined_call_operand.vmem [shape: bf16[8,400], index: 0, kind: input, shape index: {}]
  %s1 = inlined_call_operand.vmem [shape: bf16[400,128], index: 1, kind: input, shape index: {}]
  %s2 = inlined_call_operand.vmem [shape: f32[1,128], index: 2, kind: input, shape index: {}]
  %s3 = inlined_call_operand.vmem [shape: bf16[128,128], index: 3, kind: input, shape index: {}]
  %s4 = inlined_call_operand.vmem [shape: f32[1,128], index: 4, kind: input, shape index: {}]
  %s5 = inlined_call_operand.vmem [shape: bf16[128,128], index: 5, kind: input, shape index: {}]
  %s6 = inlined_call_operand.vmem [shape: f32[1,128], index: 6, kind: input, shape index: {}]
  %s7 = inlined_call_operand.vmem [shape: f32[8,128], index: 7, kind: output, shape index: {}]
  %s8 = sld [smem:[#allocation0]]
  $region38: #{net_forward.5} parent=0
    _
  %s10 = ssub.s32 1, %s8
  %s11 = scalar_select 0, %s10, %s8
  // Predicated region
  $region2: #{net_forward.5} parent=0 // pred_check
    _
  $region3: #{net_forward.5} parent=0 // pred_check_branch
    %13 = sbr.rel (0) target = $region5
  $region4: #{net_forward.5} parent=0 // pred_region
    _
  $region5: #{net_forward.5} parent=0 // pred_fallthru
    _
  // Predicated region
  $region6: #{net_forward.5} parent=0 // pred_check
    _
  $region7: #{net_forward.5} parent=0 // pred_check_branch
    %15 = sbr.rel (0) target = $region9
  $region8: #{net_forward.5} parent=0 // pred_region
    _
  $region9: #{net_forward.5} parent=0 // pred_fallthru
    _
  // Predicated region
  $region10: #{net_forward.5} parent=0 // pred_check
    _
  $region11: #{net_forward.5} parent=0 // pred_check_branch
    %17 = sbr.rel (0) target = $region13
  $region12: #{net_forward.5} parent=0 // pred_region
    _
  $region13: #{net_forward.5} parent=0 // pred_fallthru
    _
  // Predicated region
  $region14: #{net_forward.5} parent=0 // pred_check
    _
  $region15: #{net_forward.5} parent=0 // pred_check_branch
    %19 = sbr.rel (0) target = $region17
  $region16: #{net_forward.5} parent=0 // pred_region
    _
  $region17: #{net_forward.5} parent=0 // pred_fallthru
    _
  // Predicated region
  $region18: #{net_forward.5} parent=0 // pred_check
    _
  $region19: #{net_forward.5} parent=0 // pred_check_branch
    %21 = sbr.rel (0) target = $region21
  $region20: #{net_forward.5} parent=0 // pred_region
    _
  $region21: #{net_forward.5} parent=0 // pred_fallthru
    _
  // Predicated region
  $region22: #{net_forward.5} parent=0 // pred_check
    _
  $region23: #{net_forward.5} parent=0 // pred_check_branch
    %23 = sbr.rel (0) target = $region25
  $region24: #{net_forward.5} parent=0 // pred_region
    _
  $region25: #{net_forward.5} parent=0 // pred_fallthru
    _
  // Predicated region
  $region26: #{net_forward.5} parent=0 // pred_check
    _
  $region27: #{net_forward.5} parent=0 // pred_check_branch
    %25 = sbr.rel (0) target = $region29
  $region28: #{net_forward.5} parent=0 // pred_region
    _
  $region29: #{net_forward.5} parent=0 // pred_fallthru
    _
  %v27 = vld [vmem:[%s0] sm:$0xff]
  %v28 = vld [vmem:[%s0 + $0x8] sm:$0xff]
  %v29 = vld [vmem:[%s1] sm:$0xf]
  %v30 = vld [vmem:[%s1 + $0x4] sm:$0xf]
  %v31 = vld [vmem:[%s1 + $0x8] sm:$0xf]
  %v32 = vld [vmem:[%s1 + $0xc] sm:$0xf]
  %v33 = vld [vmem:[%s1 + $0x10] sm:$0xf]
  %v34 = vld [vmem:[%s1 + $0x14] sm:$0xf]
  %v35 = vld [vmem:[%s1 + $0x18] sm:$0xf]
  %v36 = vld [vmem:[%s1 + $0x1c] sm:$0xf]
  %v37 = vld [vmem:[%s1 + $0x20] sm:$0xf]
  %v38 = vld [vmem:[%s1 + $0x24] sm:$0xf]
  %v39 = vld [vmem:[%s1 + $0x28] sm:$0xf]
  %v40 = vld [vmem:[%s1 + $0x2c] sm:$0xf]
  %v41 = vld [vmem:[%s1 + $0x30] sm:$0xf]
  %v42 = vld [vmem:[%s1 + $0x34] sm:$0xf]
  %v43 = vld [vmem:[%s1 + $0x38] sm:$0xf]
  %v44 = vld [vmem:[%s1 + $0x3c] sm:$0xf]
  %v45 = vld [vmem:[%s1 + $0x40] sm:$0xf]
  %v46 = vld [vmem:[%s1 + $0x44] sm:$0xf]
  %v47 = vld [vmem:[%s1 + $0x48] sm:$0xf]
  %v48 = vld [vmem:[%s1 + $0x4c] sm:$0xf]
  %v49 = vld [vmem:[%s1 + $0x50] sm:$0xf]
  %v50 = vld [vmem:[%s1 + $0x54] sm:$0xf]
  %v51 = vld [vmem:[%s1 + $0x58] sm:$0xf]
  %v52 = vld [vmem:[%s1 + $0x5c] sm:$0xf]
  %v53 = vld [vmem:[%s1 + $0x60] sm:$0xf]
  %v54 = vld [vmem:[%s1 + $0x64] sm:$0xf]
  %v55 = vld [vmem:[%s1 + $0x68] sm:$0xf]
  %v56 = vld [vmem:[%s1 + $0x6c] sm:$0xf]
  %v57 = vld [vmem:[%s1 + $0x70] sm:$0xf]
  %v58 = vld [vmem:[%s1 + $0x74] sm:$0xf]
  %v59 = vld [vmem:[%s1 + $0x78] sm:$0xf]
  %v60 = vld [vmem:[%s1 + $0x7c] sm:$0xf]
  %v61 = vld [vmem:[%s1 + $0x80] sm:$0xf]
  %v62 = vld [vmem:[%s1 + $0x84] sm:$0xf]
  %v63 = vld [vmem:[%s1 + $0x88] sm:$0xf]
  %v64 = vld [vmem:[%s1 + $0x8c] sm:$0xf]
  %v65 = vld [vmem:[%s1 + $0x90] sm:$0xf]
  %v66 = vld [vmem:[%s1 + $0x94] sm:$0xf]
  %v67 = vld [vmem:[%s1 + $0x98] sm:$0xf]
  %v68 = vld [vmem:[%s1 + $0x9c] sm:$0xf]
  %v69 = vld [vmem:[%s1 + $0xa0] sm:$0xf]
  %v70 = vld [vmem:[%s1 + $0xa4] sm:$0xf]
  %v71 = vld [vmem:[%s1 + $0xa8] sm:$0xf]
  %v72 = vld [vmem:[%s1 + $0xac] sm:$0xf]
  %v73 = vld [vmem:[%s1 + $0xb0] sm:$0xf]
  %v74 = vld [vmem:[%s1 + $0xb4] sm:$0xf]
  %v75 = vld [vmem:[%s1 + $0xb8] sm:$0xf]
  %v76 = vld [vmem:[%s1 + $0xbc] sm:$0xf]
  %v77 = vld [vmem:[%s1 + $0xc0] sm:$0xf]
  %v78 = vld [vmem:[%s1 + $0xc4] sm:$0xf]
  %v79 = vld [vmem:[%s2] sm:$0x1]
  %v81 = vperm.slane %v79, 0
  %v85 = vunpack.c.l.b16 %v27
  %v86 = vunpack.c.h.b16 %v27
  %v87 = vunpack.c.l.b16 %v28
  %v88 = vunpack.c.h.b16 %v28
  %v89 = vpack.c.b16 %v85, %v85
  %v90 = vpack.c.b16 %v86, %v86
  %v91 = vpack.c.b16 %v87, %v87
  %v92 = vpack.c.b16 %v88, %v88
  %v146 = vunpack.c.l.b16 %v29
  %v147 = vunpack.c.l.b16 %v30
  %v148 = vunpack.c.l.b16 %v31
  %v149 = vunpack.c.l.b16 %v32
  %v150 = vunpack.c.l.b16 %v33
  %v151 = vunpack.c.l.b16 %v34
  %v152 = vunpack.c.l.b16 %v35
  %v153 = vunpack.c.l.b16 %v36
  %v154 = vunpack.c.l.b16 %v37
  %v155 = vunpack.c.l.b16 %v38
  %v156 = vunpack.c.l.b16 %v39
  %v157 = vunpack.c.l.b16 %v40
  %v158 = vunpack.c.l.b16 %v41
  %v159 = vunpack.c.l.b16 %v42
  %v160 = vunpack.c.l.b16 %v43
  %v161 = vunpack.c.l.b16 %v44
  %v162 = vunpack.c.l.b16 %v45
  %v163 = vunpack.c.l.b16 %v46
  %v164 = vunpack.c.l.b16 %v47
  %v165 = vunpack.c.l.b16 %v48
  %v166 = vunpack.c.l.b16 %v49
  %v167 = vunpack.c.l.b16 %v50
  %v168 = vunpack.c.l.b16 %v51
  %v169 = vunpack.c.l.b16 %v52
  %v170 = vunpack.c.l.b16 %v53
  %v171 = vunpack.c.l.b16 %v54
  %v172 = vunpack.c.l.b16 %v55
  %v173 = vunpack.c.l.b16 %v56
  %v174 = vunpack.c.l.b16 %v57
  %v175 = vunpack.c.l.b16 %v58
  %v176 = vunpack.c.l.b16 %v59
  %v177 = vunpack.c.l.b16 %v60
  %v178 = vunpack.c.l.b16 %v61
  %v179 = vunpack.c.l.b16 %v62
  %v180 = vunpack.c.l.b16 %v63
  %v181 = vunpack.c.l.b16 %v64
  %v182 = vunpack.c.l.b16 %v65
  %v183 = vunpack.c.l.b16 %v66
  %v184 = vunpack.c.l.b16 %v67
  %v185 = vunpack.c.l.b16 %v68
  %v186 = vunpack.c.l.b16 %v69
  %v187 = vunpack.c.l.b16 %v70
  %v188 = vunpack.c.l.b16 %v71
  %v189 = vunpack.c.l.b16 %v72
  %v190 = vunpack.c.l.b16 %v73
  %v191 = vunpack.c.l.b16 %v74
  %v192 = vunpack.c.l.b16 %v75
  %v193 = vunpack.c.l.b16 %v76
  %v194 = vunpack.c.l.b16 %v77
  %v195 = vunpack.c.l.b16 %v78
  %v196 = vpack.c.b16 %v147, %v146
  %v197 = vpack.c.b16 %v149, %v148
  %v198 = vpack.c.b16 %v151, %v150
  %v199 = vpack.c.b16 %v153, %v152
  %v200 = vpack.c.b16 %v155, %v154
  %v201 = vpack.c.b16 %v157, %v156
  %v202 = vpack.c.b16 %v159, %v158
  %v203 = vpack.c.b16 %v161, %v160
  %v204 = vpack.c.b16 %v163, %v162
  %v205 = vpack.c.b16 %v165, %v164
  %v206 = vpack.c.b16 %v167, %v166
  %v207 = vpack.c.b16 %v169, %v168
  %v208 = vpack.c.b16 %v171, %v170
  %v209 = vpack.c.b16 %v173, %v172
  %v210 = vpack.c.b16 %v175, %v174
  %v211 = vpack.c.b16 %v177, %v176
  %v212 = vpack.c.b16 %v179, %v178
  %v213 = vpack.c.b16 %v181, %v180
  %v214 = vpack.c.b16 %v183, %v182
  %v215 = vpack.c.b16 %v185, %v184
  %v216 = vpack.c.b16 %v187, %v186
  %v217 = vpack.c.b16 %v189, %v188
  %v218 = vpack.c.b16 %v191, %v190
  %v219 = vpack.c.b16 %v193, %v192
  %v220 = vpack.c.b16 %v195, %v194
  %vm246 = vcmask 130048
  %v248 = vsel %vm246, %v92, 0
  %250 = vmatpush.bf16.msra.mxu0 %v203
  %251 = vmatpush.bf16.msra.mxu0 %v202
  %252 = vmatpush.bf16.msra.mxu0 %v201
  %253 = vmatpush.bf16.msra.mxu0 %v200
  %254 = vmatpush.bf16.msra.mxu0 %v199
  %255 = vmatpush.bf16.msra.mxu0 %v198
  %256 = vmatpush.bf16.msra.mxu0 %v197
  %257 = vmatpush.bf16.msra.mxu0 %v196
  %258 = vmatmul.bf16.gmra.mxu0 %v89
  %v259 = vpop.f32.mrf.mxu0
  %v260 = vadd.f32 %v81, %v259
  %v261 = vpop.f32.mrf.mxu0
  %262 = vdwg.mxu0
  %263 = vmatpush.bf16.msra.mxu0 %v211
  %264 = vmatpush.bf16.msra.mxu0 %v210
  %265 = vmatpush.bf16.msra.mxu0 %v209
  %266 = vmatpush.bf16.msra.mxu0 %v208
  %267 = vmatpush.bf16.msra.mxu0 %v207
  %268 = vmatpush.bf16.msra.mxu0 %v206
  %269 = vmatpush.bf16.msra.mxu0 %v205
  %270 = vmatpush.bf16.msra.mxu0 %v204
  %271 = vmatmul.bf16.gmra.mxu0 %v90
  %v272 = vpop.f32.mrf.mxu0
  %v273 = vadd.f32 %v260, %v272
  %v274 = vpop.f32.mrf.mxu0
  %275 = vdwg.mxu0
  %276 = vmatpush.bf16.msra.mxu0 %v219
  %277 = vmatpush.bf16.msra.mxu0 %v218
  %278 = vmatpush.bf16.msra.mxu0 %v217
  %279 = vmatpush.bf16.msra.mxu0 %v216
  %280 = vmatpush.bf16.msra.mxu0 %v215
  %281 = vmatpush.bf16.msra.mxu0 %v214
  %282 = vmatpush.bf16.msra.mxu0 %v213
  %283 = vmatpush.bf16.msra.mxu0 %v212
  %284 = vmatmul.bf16.gmra.mxu0 %v91
  %v285 = vpop.f32.mrf.mxu0
  %v286 = vadd.f32 %v273, %v285
  %v287 = vpop.f32.mrf.mxu0
  %288 = vdwg.mxu0
  %289 = vmatpush.bf16.msra.mxu0 0
  %290 = vmatpush.bf16.msra.mxu0 0
  %291 = vmatpush.bf16.msra.mxu0 0
  %292 = vmatpush.bf16.msra.mxu0 0
  %293 = vmatpush.bf16.msra.mxu0 0
  %294 = vmatpush.bf16.msra.mxu0 0
  %295 = vmatpush.bf16.msra.mxu0 0
  %296 = vmatpush.bf16.msra.mxu0 %v220
  %297 = vmatmul.bf16.gmra.mxu0 %v248
  %v298 = vpop.f32.mrf.mxu0
  %v299 = vadd.f32 %v286, %v298
  %v300 = vpop.f32.mrf.mxu0
  %301 = vdwg.mxu0
  %v302 = vmax.f32 %v299, 0.0
  %v303 = vpack.c.bf16 %v302, %v302
  %v304 = vld [vmem:[%s3] sm:$0xf]
  %v305 = vld [vmem:[%s3 + $0x4] sm:$0xf]
  %v306 = vld [vmem:[%s3 + $0x8] sm:$0xf]
  %v307 = vld [vmem:[%s3 + $0xc] sm:$0xf]
  %v308 = vld [vmem:[%s3 + $0x10] sm:$0xf]
  %v309 = vld [vmem:[%s3 + $0x14] sm:$0xf]
  %v310 = vld [vmem:[%s3 + $0x18] sm:$0xf]
  %v311 = vld [vmem:[%s3 + $0x1c] sm:$0xf]
  %v312 = vld [vmem:[%s3 + $0x20] sm:$0xf]
  %v313 = vld [vmem:[%s3 + $0x24] sm:$0xf]
  %v314 = vld [vmem:[%s3 + $0x28] sm:$0xf]
  %v315 = vld [vmem:[%s3 + $0x2c] sm:$0xf]
  %v316 = vld [vmem:[%s3 + $0x30] sm:$0xf]
  %v317 = vld [vmem:[%s3 + $0x34] sm:$0xf]
  %v318 = vld [vmem:[%s3 + $0x38] sm:$0xf]
  %v319 = vld [vmem:[%s3 + $0x3c] sm:$0xf]
  %v320 = vld [vmem:[%s4] sm:$0x1]
  %v322 = vperm.slane %v320, 0
  %v340 = vunpack.c.l.b16 %v304
  %v341 = vunpack.c.l.b16 %v305
  %v342 = vunpack.c.l.b16 %v306
  %v343 = vunpack.c.l.b16 %v307
  %v344 = vunpack.c.l.b16 %v308
  %v345 = vunpack.c.l.b16 %v309
  %v346 = vunpack.c.l.b16 %v310
  %v347 = vunpack.c.l.b16 %v311
  %v348 = vunpack.c.l.b16 %v312
  %v349 = vunpack.c.l.b16 %v313
  %v350 = vunpack.c.l.b16 %v314
  %v351 = vunpack.c.l.b16 %v315
  %v352 = vunpack.c.l.b16 %v316
  %v353 = vunpack.c.l.b16 %v317
  %v354 = vunpack.c.l.b16 %v318
  %v355 = vunpack.c.l.b16 %v319
  %v356 = vpack.c.b16 %v341, %v340
  %v357 = vpack.c.b16 %v343, %v342
  %v358 = vpack.c.b16 %v345, %v344
  %v359 = vpack.c.b16 %v347, %v346
  %v360 = vpack.c.b16 %v349, %v348
  %v361 = vpack.c.b16 %v351, %v350
  %v362 = vpack.c.b16 %v353, %v352
  %v363 = vpack.c.b16 %v355, %v354
  %372 = vmatpush.bf16.msra.mxu0 %v363
  %373 = vmatpush.bf16.msra.mxu0 %v362
  %374 = vmatpush.bf16.msra.mxu0 %v361
  %375 = vmatpush.bf16.msra.mxu0 %v360
  %376 = vmatpush.bf16.msra.mxu0 %v359
  %377 = vmatpush.bf16.msra.mxu0 %v358
  %378 = vmatpush.bf16.msra.mxu0 %v357
  %379 = vmatpush.bf16.msra.mxu0 %v356
  %380 = vmatmul.bf16.gmra.mxu0 %v303
  %v381 = vpop.f32.mrf.mxu0
  %v382 = vadd.f32 %v322, %v381
  %v383 = vpop.f32.mrf.mxu0
  %384 = vdwg.mxu0
  %v385 = vmax.f32 %v382, 0.0
  %v386 = vpack.c.bf16 %v385, %v385
  %v387 = vld [vmem:[%s5] sm:$0xf]
  %v388 = vld [vmem:[%s5 + $0x4] sm:$0xf]
  %v389 = vld [vmem:[%s5 + $0x8] sm:$0xf]
  %v390 = vld [vmem:[%s5 + $0xc] sm:$0xf]
  %v391 = vld [vmem:[%s5 + $0x10] sm:$0xf]
  %v392 = vld [vmem:[%s5 + $0x14] sm:$0xf]
  %v393 = vld [vmem:[%s5 + $0x18] sm:$0xf]
  %v394 = vld [vmem:[%s5 + $0x1c] sm:$0xf]
  %v395 = vld [vmem:[%s5 + $0x20] sm:$0xf]
  %v396 = vld [vmem:[%s5 + $0x24] sm:$0xf]
  %v397 = vld [vmem:[%s5 + $0x28] sm:$0xf]
  %v398 = vld [vmem:[%s5 + $0x2c] sm:$0xf]
  %v399 = vld [vmem:[%s5 + $0x30] sm:$0xf]
  %v400 = vld [vmem:[%s5 + $0x34] sm:$0xf]
  %v401 = vld [vmem:[%s5 + $0x38] sm:$0xf]
  %v402 = vld [vmem:[%s5 + $0x3c] sm:$0xf]
  %v403 = vld [vmem:[%s6] sm:$0x1]
  %v405 = vperm.slane %v403, 0
  %v423 = vunpack.c.l.b16 %v387
  %v424 = vunpack.c.l.b16 %v388
  %v425 = vunpack.c.l.b16 %v389
  %v426 = vunpack.c.l.b16 %v390
  %v427 = vunpack.c.l.b16 %v391
  %v428 = vunpack.c.l.b16 %v392
  %v429 = vunpack.c.l.b16 %v393
  %v430 = vunpack.c.l.b16 %v394
  %v431 = vunpack.c.l.b16 %v395
  %v432 = vunpack.c.l.b16 %v396
  %v433 = vunpack.c.l.b16 %v397
  %v434 = vunpack.c.l.b16 %v398
  %v435 = vunpack.c.l.b16 %v399
  %v436 = vunpack.c.l.b16 %v400
  %v437 = vunpack.c.l.b16 %v401
  %v438 = vunpack.c.l.b16 %v402
  %v439 = vpack.c.b16 %v424, %v423
  %v440 = vpack.c.b16 %v426, %v425
  %v441 = vpack.c.b16 %v428, %v427
  %v442 = vpack.c.b16 %v430, %v429
  %v443 = vpack.c.b16 %v432, %v431
  %v444 = vpack.c.b16 %v434, %v433
  %v445 = vpack.c.b16 %v436, %v435
  %v446 = vpack.c.b16 %v438, %v437
  %455 = vmatpush.bf16.msra.mxu0 %v446
  %456 = vmatpush.bf16.msra.mxu0 %v445
  %457 = vmatpush.bf16.msra.mxu0 %v444
  %458 = vmatpush.bf16.msra.mxu0 %v443
  %459 = vmatpush.bf16.msra.mxu0 %v442
  %460 = vmatpush.bf16.msra.mxu0 %v441
  %461 = vmatpush.bf16.msra.mxu0 %v440
  %462 = vmatpush.bf16.msra.mxu0 %v439
  %463 = vmatmul.bf16.gmra.mxu0 %v386
  %v464 = vpop.f32.mrf.mxu0
  %v465 = vadd.f32 %v405, %v464
  %v466 = vpop.f32.mrf.mxu0
  %467 = vdwg.mxu0
  %468 = vst [vmem:[%s7] sm:$0xff] %v465
  // Predicated region
  $region30: #{net_forward.5} parent=0 // pred_check
    _
  $region31: #{net_forward.5} parent=0 // pred_check_branch
    %470 = sbr.rel (0) target = $region33
  $region32: #{net_forward.5} parent=0 // pred_region
    _
  $region33: #{net_forward.5} parent=0 // pred_fallthru
    _
  // Predicated region
  $region34: #{net_forward.5} parent=0 // pred_check
    _
  $region35: #{net_forward.5} parent=0 // pred_check_branch
    %472 = sbr.rel (0) target = $region37
  $region36: #{net_forward.5} parent=0 // pred_region
    _
  $region37: #{net_forward.5} parent=0 // pred_fallthru
    _

</llo_original>
